<compile_context>
chip_gen: v7x
topology: tpu7x:2x2x1
jax: 0.10.0
libtpu: 0.0.40
codegen_flags: <defaults>
</compile_context>

<pallas_src>
import jax
import jax.numpy as jnp
from jax.experimental import pallas as pl
from jax.experimental.pallas import tpu as pltpu


# ----------------------------------------------------------------------------
# Kernels
# ----------------------------------------------------------------------------
def _ohe_kernel_aligned(x_ref, o_ref):
    # C % 128 == 0: the split point of the (TB, 2*C) output block lands on a
    # lane-tile boundary, so both halves are plain unmasked stores.
    x = x_ref[...]
    c = x.shape[-1]
    o_ref[:, :c] = 1 - x
    o_ref[:, c:] = x


def _ohe_kernel_general(x_ref, o_ref):
    # General C: build the full lane-dense (TB, 2*C) slab in-register with a
    # lane-dim concatenate (XLU/VPU slack in a memory-bound kernel) and issue
    # one dense full-block store.  The output block stays sublane-dense, so
    # writeback DMA runs at full rate.
    x = x_ref[...]
    o_ref[...] = jnp.concatenate([1 - x, x], axis=-1)


# ----------------------------------------------------------------------------
# Tiling helpers
# ----------------------------------------------------------------------------
def _vmem_capacity_bytes() -> int:
    try:
        info = pltpu.get_tpu_info()
        cap = int(getattr(info, "vmem_capacity_bytes", 0))
        if cap > 0:
            return cap
    except Exception:
        pass
    return 64 * 1024 * 1024  # conservative default (v7x per-core VMEM)


def _sublane_multiple(itemsize: int) -> int:
    # f32 -> 8, bf16 -> 16, int8/fp8 -> 32 (sub-32-bit dtypes pack sublanes).
    return max(8, 32 // max(1, itemsize))


def _round_up(x: int, m: int) -> int:
    return ((x + m - 1) // m) * m


def _choose_row_tile(B: int, C: int, itemsize: int, step_budget: int) -> int:
    sub = _sublane_multiple(itemsize)
    row_bytes = 3 * C * itemsize          # input C + output 2*C per batch row
    tb = step_budget // max(1, row_bytes)
    tb = max(sub, (tb // sub) * sub)
    if tb >= B:
        if B >= 2 * sub:
            # Force >= 2 grid steps: megacore sharding on v7x and in/out DMA
            # overlap on every generation.
            tb = _round_up(-(-B // 2), sub)
        else:
            tb = B                         # single block equal to full batch
    return tb


# ----------------------------------------------------------------------------
# Wrapper
# ----------------------------------------------------------------------------
def sigmoid_to_ohe(x: jax.Array, *, min_pallas_bytes: int = 256 * 1024) -> jax.Array:
    """Pallas equivalent of torch.hstack([1 - x, x]) for 2-D x of shape (B, C)."""
    assert x.ndim == 2, "expected (B, C) sigmoid output"
    B, C = x.shape
    itemsize = jnp.dtype(x.dtype).itemsize
    total_bytes = B * C * itemsize
    sub = _sublane_multiple(itemsize)

    vmem_cap = _vmem_capacity_bytes()
    # Per-step payload target (input + output block bytes); double buffering
    # makes actual VMEM use ~2x this.  ~12.8 MiB on v7x, ~24 MiB on v5e/v6e.
    step_budget = max(4 << 20, min(24 << 20, vmem_cap // 5))

    # XLA fallback: (a) tiny inputs where launch + DMA setup dwarfs the copy;
    # (b) C so wide that even a minimal sublane-multiple row block exceeds the
    # per-step VMEM budget (column tiling not worth it for this module).
    if total_bytes < min_pallas_bytes or sub * 3 * C * itemsize > step_budget:
        return jnp.concatenate([1 - x, x], axis=1)

    TB = _choose_row_tile(B, C, itemsize, step_budget)
    grid = (pl.cdiv(B, TB),)

    vmem_limit = int(min(vmem_cap * 3 // 4, 2 * step_budget + (16 << 20)))
    cparams = pltpu.CompilerParams(
        dimension_semantics=("parallel",),
        vmem_limit_bytes=vmem_limit,
    )
    cost = pl.CostEstimate(
        flops=B * C,
        transcendentals=0,
        bytes_accessed=3 * B * C * itemsize,
    )
    kernel = _ohe_kernel_aligned if C % 128 == 0 else _ohe_kernel_general

    return pl.pallas_call(
        kernel,
        out_shape=jax.ShapeDtypeStruct((B, 2 * C), x.dtype),
        grid=grid,
        in_specs=[pl.BlockSpec((TB, C), lambda i: (i, 0))],
        out_specs=pl.BlockSpec((TB, 2 * C), lambda i: (i, 0)),
        compiler_params=cparams,
        cost_estimate=cost,
    )(x)


# ----------------------------------------------------------------------------
# Self-test
# ----------------------------------------------------------------------------
if __name__ == "__main__":
    key = jax.random.PRNGKey(0)
    k1, k2, k3, k4 = jax.random.split(key, 4)

    def ref(v):
        return jnp.concatenate([1 - v, v], axis=1)

    # Case 1: classifier-scale tiny input (module's natural shape) -> XLA fallback.
    x1 = jax.nn.sigmoid(jax.random.normal(k1, (8, 4), jnp.float32))
    o1 = jax.block_until_ready(sigmoid_to_ohe(x1))
    assert o1.shape == (8, 8)
    assert jnp.allclose(o1, ref(x1), atol=1e-6)

    # Case 2: same tiny shape forced through the Pallas path (general kernel).
    o2 = jax.block_until_ready(sigmoid_to_ohe(x1, min_pallas_bytes=0))
    assert o2.shape == (8, 8)
    assert jnp.allclose(o2, ref(x1), atol=1e-6)

    # Case 3: lane-aligned width (C % 128 == 0) -> aligned two-store kernel, 2 grid steps.
    x3 = jax.nn.sigmoid(jax.random.normal(k2, (512, 256), jnp.float32))
    o3 = jax.block_until_ready(sigmoid_to_ohe(x3))
    assert o3.shape == (512, 512)
    assert jnp.allclose(o3, ref(x3), atol=1e-6)

    # Case 4: non-aligned width -> general (concatenate) kernel, 2 grid steps.
    x4 = jax.nn.sigmoid(jax.random.normal(k3, (768, 100), jnp.float32))
    o4 = jax.block_until_ready(sigmoid_to_ohe(x4))
    assert o4.shape == (768, 200)
    assert jnp.allclose(o4, ref(x4), atol=1e-6)

    # Case 5: bf16 input exercising the 16-row packed-sublane rounding.
    x5 = jax.nn.sigmoid(jax.random.normal(k4, (1024, 200), jnp.float32)).astype(jnp.bfloat16)
    o5 = jax.block_until_ready(sigmoid_to_ohe(x5))
    assert o5.shape == (1024, 400)
    assert jnp.allclose(o5.astype(jnp.float32), ref(x5).astype(jnp.float32), atol=1e-2)

    print("KERNEL_OK")
</pallas_src>

<mosaic_0001>
module attributes {stable_mosaic.version = 11 : i64} {
  func.func @_ohe_kernel_general(%arg0: i32, %arg1: memref<8x4xf32, #tpu.memory_space<vmem>>, %arg2: memref<8x8xf32, #tpu.memory_space<vmem>>) attributes {dimension_semantics = [#tpu.dimension_semantics<parallel>], iteration_bounds = array<i64: 1>, scalar_prefetch = 0 : i64, scratch_operands = 0 : i64, tpu.core_type = #tpu.core_type<tc>, window_params = [{transform_indices = @transform_0, window_bounds = array<i64: 8, 4>}, {transform_indices = @transform_1, window_bounds = array<i64: 8, 8>}]} {
    %c0 = arith.constant 0 : index
    %c0_0 = arith.constant 0 : index
    %0 = vector.load %arg1[%c0, %c0_0] : memref<8x4xf32, #tpu.memory_space<vmem>>, vector<8x4xf32>
    %cst = arith.constant 1.000000e+00 : f32
    %1 = vector.broadcast %cst : f32 to vector<8x4xf32>
    %2 = arith.subf %1, %0 : vector<8x4xf32>
    %3 = tpu.concatenate %2, %0 in 1 : vector<8x4xf32>, vector<8x4xf32> -> vector<8x8xf32>
    %c0_1 = arith.constant 0 : index
    %c0_2 = arith.constant 0 : index
    %4 = vector.load %arg2[%c0_1, %c0_2] : memref<8x8xf32, #tpu.memory_space<vmem>>, vector<8x8xf32>
    tpu.vector_store %arg2[%c0_1, %c0_2], %3 {strides = array<i32>} : memref<8x8xf32, #tpu.memory_space<vmem>>, vector<8x8xf32>,
    return
  }
  func.func @transform_0(%arg0: i32) -> (i32, i32) {
    %c0_i32 = arith.constant 0 : i32
    %c0_i32_0 = arith.constant 0 : i32
    return %arg0, %c0_i32 : i32, i32
  }
  func.func @transform_1(%arg0: i32) -> (i32, i32) {
    %c0_i32 = arith.constant 0 : i32
    %c0_i32_0 = arith.constant 0 : i32
    return %arg0, %c0_i32 : i32, i32
  }
}

</mosaic_0001>

<llo_original>
// kernel: tpu_custom_call.1
$region0: #{tpu_custom_call.1}
  #allocation0 [shape = 'u32[]', space=smem, size = 0x4, offset = 0x4, fixed_abs, tag = 'smem constant byte address 0x4 - core index']
  #allocation1 [shape = 'u32[144,128]{1,0:T(1,128)}', space=vmem, size = 0x12000, scoped, tag = 'internal scratch']
  %s0 = inlined_call_operand.vmem [shape: f32[8,4], index: 0, kind: input, shape index: {}]
  %s1 = inlined_call_operand.hbm [shape: f32[8,8], index: 1, kind: output, shape index: {}]
  %s2 = sld [smem:[#allocation0]]
  $region14: #{tpu_custom_call.1} parent=0
    _
  %s4 = ssub.s32 1, %s2
  %s5 = scalar_select 0, %s4, %s2
  $region1: #{tpu_custom_call.1} parent=0
    #allocation2 [shape = 'u8[4096]{0}', space=vmem, size = 0x1000, scoped, tag = 'output window, operand 0, single buffered']
    #allocation3 [shape = 's32[1]{0}', space=sflag, size = 0x4, scoped, tag = 'scoped memory for tpu_custom_call.1']
    %6 = vsyncpa [#allocation3], 0
    // Predicated region
    $region2: #{tpu_custom_call.1} parent=1 // pred_check
      _
    $region3: #{tpu_custom_call.1} parent=1 // pred_check_branch
      %8 = sbr.rel (0) target = $region5
    $region4: #{tpu_custom_call.1} parent=1 // pred_region
      _
    $region5: #{tpu_custom_call.1} parent=1 // pred_fallthru
      _
    %v9 = vld [vmem:[%s0] sm:$0xff]
    %v10 = vsub.f32 1.0, %v9
    %12 = vrot.lane.b32.xlu0 %v9, 4
    %v13 = vpop.permute.xlu0 %12
    %vm15 = vcmask 31744
    %v16 = vsel %vm15, %v10, %v13
    %vm17 = vcmask 64512
    %18 = vst.msk [vmem:[#allocation2] sm:$0xff] %vm17, %v16
    // Predicated region
    $region6: #{tpu_custom_call.1} parent=1 // pred_check
      _
    $region7: #{tpu_custom_call.1} parent=1 // pred_check_branch
      %20 = sbr.rel (0) target = $region9
    $region8: #{tpu_custom_call.1} parent=1 // pred_region
      %s22 = ssub.s32 128, 128
      %23 = vsyncadd [#allocation3], %s22
      %s25 = sshll.u32 [#allocation2], 4
      %s26 = int_to_ptr.vmem [resolvable:$true] %s25
      %28 = dma.vmem_to_hbm [thread:$0]  %s26, 128, %s1, [#allocation3]
    $region9: #{tpu_custom_call.1} parent=1 // pred_fallthru
      _
    // Predicated region
    $region10: #{tpu_custom_call.1} parent=1 // pred_check
      _
    $region11: #{tpu_custom_call.1} parent=1 // pred_check_branch
      %30 = sbr.rel (0) target = $region13
    $region12: #{tpu_custom_call.1} parent=1 // pred_region
      %31 = dma.done [#allocation3], 128
    $region13: #{tpu_custom_call.1} parent=1 // pred_fallthru
      _
    %32 = vsyncpa [#allocation3], 1

</llo_original>
